<compile_context>
chip_gen: v7x
topology: tpu7x:2x2x1
jax: 0.10.0
libtpu: 0.0.40
codegen_flags: <defaults>
</compile_context>

<pallas_src>
import functools

import jax
import jax.numpy as jnp
from jax import lax
from jax.experimental import pallas as pl
from jax.experimental.pallas import tpu as pltpu

TREND_POLY = 3
_HIGH = lax.Precision.HIGHEST


def _gelu_tanh(x):
    # tanh-approximate GELU (stands in for the injected `act` module).
    # TODO(synk): if the model instantiates nn.GELU() with the exact erf form,
    #             swap this for the erf formulation (~1e-3 numerical delta).
    return 0.5 * x * (1.0 + jnp.tanh(0.7978845608028654 * (x + 0.044715 * x * x * x)))


# -----------------------------------------------------------------------------
# Kernel: two lane-dense MXU matmuls + GELU over a block of TB batch rows.
#   x_ref  : (TB, in_dim*in_feat)
#   a_ref  : (in_dim*in_feat, PFP)     conv1 (3 taps + zero pad baked in, lane-padded)
#   b1_ref : (1, PFP)                  conv1 bias (repeated per position, zero-padded)
#   c_ref  : (PFP, out_dim*out_feat)   conv2 taps+pad fused with poly_space
#   b2_ref : (1, out_dim*out_feat)     (sum_j poly[j,d]) * conv2 bias
#   o_ref  : (TB, out_dim*out_feat)    lane-dense output slab
# -----------------------------------------------------------------------------
def trend_block_kernel(x_ref, a_ref, b1_ref, c_ref, b2_ref, o_ref):
    h = jnp.dot(x_ref[...], a_ref[...], preferred_element_type=jnp.float32)
    h = _gelu_tanh(h + b1_ref[...])                          # f32 activation (EUP)
    out = jnp.dot(h.astype(c_ref.dtype), c_ref[...],
                  preferred_element_type=jnp.float32)
    o_ref[...] = (out + b2_ref[...]).astype(o_ref.dtype)


def _round_up(v, m):
    return -(-v // m) * m


def _fuse_trend_weights(w1, b1, w2, b2, poly, in_dim, in_feat, out_dim, out_feat,
                        dtype, pfp):
    """Fold the two k=3 convs (+ zero padding) and poly_space into dense matrices,
    lane-padding the hidden dim (3*in_feat) up to `pfp` (multiple of 128)."""
    F, OF, D, P = in_feat, out_feat, out_dim, TREND_POLY
    # S[k, g, f] = 1 iff g == f + k - 1   ('same' conv tap selection with zero pad)
    S = jnp.stack([jnp.eye(F, k=1 - k, dtype=jnp.float32) for k in range(3)], axis=0)
    # A[c*F + g, p*F + f] = w1[p, c, g - f + 1]  (0 outside the 3-tap window)
    A = jnp.einsum('pck,kgf->cgpf', w1, S, precision=_HIGH).reshape(in_dim * F, P * F)
    b1_row = jnp.repeat(b1, F).reshape(1, P * F)

    # T[k, p, j] = 1 iff j == p + 1 - k   (conv2 over the length-3 axis, zero pad)
    T = jnp.stack([jnp.eye(P, k=1 - k, dtype=jnp.float32) for k in range(3)], axis=0)
    PT = jnp.einsum('kpj,jd->kpd', T, poly, precision=_HIGH)              # (3, P, D)
    # C[p*F + f, d*OF + o] = sum_{j,k : k = p - j + 1} w2[o, f, k] * poly[j, d]
    C = jnp.einsum('ofk,kpd->pfdo', w2, PT, precision=_HIGH).reshape(P * F, D * OF)
    # conv2 bias goes through the poly projection: sum_j poly[j, d] * b2[o]
    b2_row = (poly.sum(axis=0)[:, None] * b2[None, :]).reshape(1, D * OF)

    pad = pfp - P * F
    if pad:
        # Zero-padded hidden columns: gelu(0 + 0) = 0 and the matching zero rows of
        # C contribute nothing, so numerics are unchanged.
        A = jnp.pad(A, ((0, 0), (0, pad)))
        b1_row = jnp.pad(b1_row, ((0, 0), (0, pad)))
        C = jnp.pad(C, ((0, pad), (0, 0)))

    return (A.astype(dtype), b1_row.astype(jnp.float32),
            C.astype(dtype), b2_row.astype(jnp.float32))


def _choose_batch_tile(B, block_b, itemsize):
    """Dtype-aware batch tile: native sublane packing multiple, large by default,
    and split in two when the whole batch would fit a single block (v7x 2 TCs)."""
    mult = max(8, 32 // itemsize)           # 8 for f32, 16 for bf16, 32 for int8/fp8
    tb = max((block_b // mult) * mult, mult)
    if B <= tb:
        half = _round_up(-(-B // 2), mult)  # ceil(B/2) rounded up to the packing mult
        tb = half if half < B else B        # >=2 grid steps when B is big enough
    return tb


@functools.partial(jax.jit, static_argnames=("block_b",))
def trend_block(x, w1, b1, w2, b2, poly, *, block_b=1024):
    """x: (B, in_dim, in_feat) -> (B, out_dim, out_feat).  Matches TrendBlock.forward.

    Weight fusion runs inside this jit, so with static weights it fuses/folds once
    per compile instead of being re-streamed per call.
    """
    B, in_dim, in_feat = x.shape
    out_feat = w2.shape[0]
    out_dim = poly.shape[1]
    CF = in_dim * in_feat
    PF = TREND_POLY * in_feat
    PFP = _round_up(PF, 128)        # hidden dim padded to full 128-lane vregs
    DF = out_dim * out_feat
    # NOTE: DF should be a multiple of 128 for unmasked lane-dense stores (it is 128
    # in the default config); other configs silently fall back to masked vst.msk.

    itemsize = jnp.dtype(x.dtype).itemsize
    A, b1_row, C, b2_row = _fuse_trend_weights(
        w1, b1, w2, b2, poly, in_dim, in_feat, out_dim, out_feat, x.dtype, PFP)

    TB = _choose_batch_tile(B, block_b, itemsize)
    grid = (pl.cdiv(B, TB),)

    # Per-step VMEM: double-buffered x/out blocks + resident weight slabs + bias rows.
    vmem_est = (2 * TB * (CF + DF)) * itemsize + (CF * PFP + PFP * DF) * itemsize \
               + 4 * (PFP + DF)
    vmem_limit = None
    if vmem_est > 24 * 1024 * 1024:         # bump scoped limit only for big configs
        vmem_limit = int(min(2 * vmem_est, 128 * 1024 * 1024))

    x2 = x.reshape(B, CF)   # (B, in_dim*in_feat): batch on sublanes, lane-dense

    cost = pl.CostEstimate(
        flops=2 * B * (CF * PFP + PFP * DF),
        transcendentals=B * PFP,
        bytes_accessed=B * (CF + DF) * itemsize
        + (CF * PFP + PFP * DF) * itemsize
        + 4 * (PFP + DF),
    )

    out2 = pl.pallas_call(
        trend_block_kernel,
        out_shape=jax.ShapeDtypeStruct((B, DF), x.dtype),
        grid_spec=pltpu.PrefetchScalarGridSpec(
            num_scalar_prefetch=0,
            grid=grid,
            in_specs=[
                pl.BlockSpec((TB, CF), lambda i: (i, 0)),    # x batch block
                pl.BlockSpec((CF, PFP), lambda i: (0, 0)),   # A (constant block -> resident)
                pl.BlockSpec((1, PFP), lambda i: (0, 0)),    # b1 row
                pl.BlockSpec((PFP, DF), lambda i: (0, 0)),   # C
                pl.BlockSpec((1, DF), lambda i: (0, 0)),     # fused output bias row
            ],
            out_specs=pl.BlockSpec((TB, DF), lambda i: (i, 0)),  # lane-dense slab
        ),
        compiler_params=pltpu.CompilerParams(
            # independent batch blocks -> shard the grid across v7x's 2 TensorCores
            dimension_semantics=("parallel",),
            vmem_limit_bytes=vmem_limit,
        ),
        cost_estimate=cost,
    )(x2, A, b1_row, C, b2_row)

    return out2.reshape(B, out_dim, out_feat)


def trend_block_ref(x, w1, b1, w2, b2, poly):
    """Pure-JAX reference with identical semantics (for verification)."""
    B, in_dim, in_feat = x.shape
    out_feat = w2.shape[0]
    xp = jnp.pad(x, ((0, 0), (0, 0), (1, 1)))
    h = jnp.zeros((B, TREND_POLY, in_feat), jnp.float32)
    for k in range(3):
        h = h + jnp.einsum('pc,bct->bpt', w1[:, :, k], xp[:, :, k:k + in_feat],
                           precision=_HIGH)
    h = _gelu_tanh(h + b1[None, :, None])
    ht = jnp.transpose(h, (0, 2, 1))                     # (B, in_feat, 3)
    hp = jnp.pad(ht, ((0, 0), (0, 0), (1, 1)))           # (B, in_feat, 5)
    o2 = jnp.zeros((B, out_feat, TREND_POLY), jnp.float32)
    for k in range(3):
        o2 = o2 + jnp.einsum('of,bfj->boj', w2[:, :, k], hp[:, :, k:k + TREND_POLY],
                             precision=_HIGH)
    o2 = o2 + b2[None, :, None]
    tv = jnp.einsum('boj,jd->bod', o2, poly, precision=_HIGH)   # (B, out_feat, out_dim)
    return jnp.transpose(tv, (0, 2, 1))                  # (B, out_dim, out_feat)


if __name__ == "__main__":
    # Small shapes implied by the module: input (B, in_dim, in_feat)
    in_dim, in_feat = 4, 16
    out_dim, out_feat = 8, 16

    key = jax.random.PRNGKey(0)
    kx_small, kx_big, kw1, kb1, kw2, kb2 = jax.random.split(key, 6)

    # Conv1d(in_dim -> 3, k=3): weight (3, in_dim, 3), bias (3,)
    w1 = jax.random.normal(kw1, (TREND_POLY, in_dim, 3), jnp.float32) * 0.2
    b1 = jax.random.normal(kb1, (TREND_POLY,), jnp.float32) * 0.1
    # Conv1d(in_feat -> out_feat, k=3): weight (out_feat, in_feat, 3), bias (out_feat,)
    w2 = jax.random.normal(kw2, (out_feat, in_feat, 3), jnp.float32) * 0.2
    b2 = jax.random.normal(kb2, (out_feat,), jnp.float32) * 0.1

    # poly_space: (3, out_dim)
    lin_space = jnp.arange(1, out_dim + 1, dtype=jnp.float32) / (out_dim + 1)
    poly = jnp.stack([lin_space ** float(p + 1) for p in range(TREND_POLY)], axis=0)

    # Test both a tiny batch (single full-batch block) and a batch that exercises
    # multi-block tiling with a masked partial final block.
    for B, kb in ((2, kx_small), (50, kx_big)):
        x = jax.random.normal(kb, (B, in_dim, in_feat), jnp.float32)
        out = jax.block_until_ready(trend_block(x, w1, b1, w2, b2, poly))
        ref = jax.block_until_ready(trend_block_ref(x, w1, b1, w2, b2, poly))
        assert out.shape == (B, out_dim, out_feat), out.shape
        max_err = float(jnp.max(jnp.abs(out - ref)))
        assert jnp.allclose(out, ref, atol=1e-3, rtol=1e-3), max_err

    print("KERNEL_OK")
</pallas_src>

<mosaic_0001>
module attributes {stable_mosaic.version = 11 : i64} {
  func.func @trend_block_kernel(%arg0: i32, %arg1: memref<2x64xf32, #tpu.memory_space<vmem>>, %arg2: memref<64x128xf32, #tpu.memory_space<vmem>>, %arg3: memref<1x128xf32, #tpu.memory_space<vmem>>, %arg4: memref<128x128xf32, #tpu.memory_space<vmem>>, %arg5: memref<1x128xf32, #tpu.memory_space<vmem>>, %arg6: memref<2x128xf32, #tpu.memory_space<vmem>>) attributes {dimension_semantics = [#tpu.dimension_semantics<parallel>], iteration_bounds = array<i64: 1>, scalar_prefetch = 0 : i64, scratch_operands = 0 : i64, tpu.core_type = #tpu.core_type<tc>, window_params = [{transform_indices = @transform_0, window_bounds = array<i64: 2, 64>}, {pipeline_mode = #tpu.pipeline_mode<synchronous>, transform_indices = @transform_1, window_bounds = array<i64: 64, 128>}, {pipeline_mode = #tpu.pipeline_mode<synchronous>, transform_indices = @transform_2, window_bounds = array<i64: 1, 128>}, {pipeline_mode = #tpu.pipeline_mode<synchronous>, transform_indices = @transform_3, window_bounds = array<i64: 128, 128>}, {pipeline_mode = #tpu.pipeline_mode<synchronous>, transform_indices = @transform_4, window_bounds = array<i64: 1, 128>}, {transform_indices = @transform_5, window_bounds = array<i64: 2, 128>}]} {
    %c0 = arith.constant 0 : index
    %c0_0 = arith.constant 0 : index
    %0 = vector.load %arg1[%c0, %c0_0] : memref<2x64xf32, #tpu.memory_space<vmem>>, vector<2x64xf32>
    %c0_1 = arith.constant 0 : index
    %c0_2 = arith.constant 0 : index
    %1 = vector.load %arg2[%c0_1, %c0_2] : memref<64x128xf32, #tpu.memory_space<vmem>>, vector<64x128xf32>
    %cst = arith.constant dense<0.000000e+00> : vector<2x128xf32>
    %2 = tpu.matmul %0, %1, %cst {dimension_numbers = #tpu.dot_dimension_numbers<[1], [0], [0], [1], [0, 0, 1, 1], [], []>} : vector<2x64xf32>, vector<64x128xf32>, vector<2x128xf32> -> vector<2x128xf32>
    %c0_3 = arith.constant 0 : index
    %c0_4 = arith.constant 0 : index
    %3 = vector.load %arg3[%c0_3, %c0_4] : memref<1x128xf32, #tpu.memory_space<vmem>>, vector<1x128xf32>
    %4 = vector.broadcast %3 : vector<1x128xf32> to vector<2x128xf32>
    %5 = arith.addf %2, %4 : vector<2x128xf32>
    %cst_5 = arith.constant 5.000000e-01 : f32
    %6 = vector.broadcast %cst_5 : f32 to vector<2x128xf32>
    %7 = arith.mulf %6, %5 : vector<2x128xf32>
    %cst_6 = arith.constant 4.471500e-02 : f32
    %8 = vector.broadcast %cst_6 : f32 to vector<2x128xf32>
    %9 = arith.mulf %8, %5 : vector<2x128xf32>
    %10 = arith.mulf %9, %5 : vector<2x128xf32>
    %11 = arith.mulf %10, %5 : vector<2x128xf32>
    %12 = arith.addf %5, %11 : vector<2x128xf32>
    %cst_7 = arith.constant 0.797884583 : f32
    %13 = vector.broadcast %cst_7 : f32 to vector<2x128xf32>
    %14 = arith.mulf %13, %12 : vector<2x128xf32>
    %15 = math.tanh %14 : vector<2x128xf32>
    %cst_8 = arith.constant 1.000000e+00 : f32
    %16 = vector.broadcast %cst_8 : f32 to vector<2x128xf32>
    %17 = arith.addf %16, %15 : vector<2x128xf32>
    %18 = arith.mulf %7, %17 : vector<2x128xf32>
    %c0_9 = arith.constant 0 : index
    %c0_10 = arith.constant 0 : index
    %19 = vector.load %arg4[%c0_9, %c0_10] : memref<128x128xf32, #tpu.memory_space<vmem>>, vector<128x128xf32>
    %cst_11 = arith.constant dense<0.000000e+00> : vector<2x128xf32>
    %20 = tpu.matmul %18, %19, %cst_11 {dimension_numbers = #tpu.dot_dimension_numbers<[1], [0], [0], [1], [0, 0, 1, 1], [], []>} : vector<2x128xf32>, vector<128x128xf32>, vector<2x128xf32> -> vector<2x128xf32>
    %c0_12 = arith.constant 0 : index
    %c0_13 = arith.constant 0 : index
    %21 = vector.load %arg5[%c0_12, %c0_13] : memref<1x128xf32, #tpu.memory_space<vmem>>, vector<1x128xf32>
    %22 = vector.broadcast %21 : vector<1x128xf32> to vector<2x128xf32>
    %23 = arith.addf %20, %22 : vector<2x128xf32>
    %c0_14 = arith.constant 0 : index
    %c0_15 = arith.constant 0 : index
    %24 = vector.load %arg6[%c0_14, %c0_15] : memref<2x128xf32, #tpu.memory_space<vmem>>, vector<2x128xf32>
    tpu.vector_store %arg6[%c0_14, %c0_15], %23 {strides = array<i32>} : memref<2x128xf32, #tpu.memory_space<vmem>>, vector<2x128xf32>,
    return
  }
  func.func @transform_0(%arg0: i32) -> (i32, i32) {
    %c0_i32 = arith.constant 0 : i32
    %c0_i32_0 = arith.constant 0 : i32
    return %arg0, %c0_i32 : i32, i32
  }
  func.func @transform_1(%arg0: i32) -> (i32, i32) {
    %c0_i32 = arith.constant 0 : i32
    %c0_i32_0 = arith.constant 0 : i32
    %c0_i32_1 = arith.constant 0 : i32
    return %c0_i32, %c0_i32_0 : i32, i32
  }
  func.func @transform_2(%arg0: i32) -> (i32, i32) {
    %c0_i32 = arith.constant 0 : i32
    %c0_i32_0 = arith.constant 0 : i32
    %c0_i32_1 = arith.constant 0 : i32
    return %c0_i32, %c0_i32_0 : i32, i32
  }
  func.func @transform_3(%arg0: i32) -> (i32, i32) {
    %c0_i32 = arith.constant 0 : i32
    %c0_i32_0 = arith.constant 0 : i32
    %c0_i32_1 = arith.constant 0 : i32
    return %c0_i32, %c0_i32_0 : i32, i32
  }
  func.func @transform_4(%arg0: i32) -> (i32, i32) {
    %c0_i32 = arith.constant 0 : i32
    %c0_i32_0 = arith.constant 0 : i32
    %c0_i32_1 = arith.constant 0 : i32
    return %c0_i32, %c0_i32_0 : i32, i32
  }
  func.func @transform_5(%arg0: i32) -> (i32, i32) {
    %c0_i32 = arith.constant 0 : i32
    %c0_i32_0 = arith.constant 0 : i32
    return %arg0, %c0_i32 : i32, i32
  }
}

</mosaic_0001>

<llo_original>
// kernel: trend_block.1
$region0: #{trend_block.1}
  #allocation0 [shape = 'u32[]', space=smem, size = 0x4, offset = 0x4, fixed_abs, tag = 'smem constant byte address 0x4 - core index']
  #allocation1 [shape = 'u32[144,128]{1,0:T(1,128)}', space=vmem, size = 0x12000, scoped, tag = 'internal scratch']
  %s0 = inlined_call_operand.vmem [shape: f32[2,64], index: 0, kind: input, shape index: {}]
  %s1 = inlined_call_operand.vmem [shape: f32[64,128], index: 1, kind: input, shape index: {}]
  %s2 = inlined_call_operand.vmem [shape: f32[1,128], index: 2, kind: input, shape index: {}]
  %s3 = inlined_call_operand.vmem [shape: f32[128,128], index: 3, kind: input, shape index: {}]
  %s4 = inlined_call_operand.vmem [shape: f32[1,128], index: 4, kind: input, shape index: {}]
  %s5 = inlined_call_operand.vmem [shape: f32[2,128], index: 5, kind: output, shape index: {}]
  %s6 = sld [smem:[#allocation0]]
  $region30: #{trend_block.1} parent=0
    _
  %s8 = ssub.s32 1, %s6
  %s9 = scalar_select 0, %s8, %s6
  // Predicated region
  $region2: #{trend_block.1} parent=0 // pred_check
    _
  $region3: #{trend_block.1} parent=0 // pred_check_branch
    %11 = sbr.rel (0) target = $region5
  $region4: #{trend_block.1} parent=0 // pred_region
    _
  $region5: #{trend_block.1} parent=0 // pred_fallthru
    _
  // Predicated region
  $region6: #{trend_block.1} parent=0 // pred_check
    _
  $region7: #{trend_block.1} parent=0 // pred_check_branch
    %13 = sbr.rel (0) target = $region9
  $region8: #{trend_block.1} parent=0 // pred_region
    _
  $region9: #{trend_block.1} parent=0 // pred_fallthru
    _
  // Predicated region
  $region10: #{trend_block.1} parent=0 // pred_check
    _
  $region11: #{trend_block.1} parent=0 // pred_check_branch
    %15 = sbr.rel (0) target = $region13
  $region12: #{trend_block.1} parent=0 // pred_region
    _
  $region13: #{trend_block.1} parent=0 // pred_fallthru
    _
  // Predicated region
  $region14: #{trend_block.1} parent=0 // pred_check
    _
  $region15: #{trend_block.1} parent=0 // pred_check_branch
    %17 = sbr.rel (0) target = $region17
  $region16: #{trend_block.1} parent=0 // pred_region
    _
  $region17: #{trend_block.1} parent=0 // pred_fallthru
    _
  // Predicated region
  $region18: #{trend_block.1} parent=0 // pred_check
    _
  $region19: #{trend_block.1} parent=0 // pred_check_branch
    %19 = sbr.rel (0) target = $region21
  $region20: #{trend_block.1} parent=0 // pred_region
    _
  $region21: #{trend_block.1} parent=0 // pred_fallthru
    _
  %v20 = vld [vmem:[%s0] sm:$0x3]
  %v21 = vld [vmem:[%s1] sm:$0xff]
  %v22 = vld [vmem:[%s1 + $0x8] sm:$0xff]
  %v23 = vld [vmem:[%s1 + $0x10] sm:$0xff]
  %v24 = vld [vmem:[%s1 + $0x18] sm:$0xff]
  %v25 = vld [vmem:[%s1 + $0x20] sm:$0xff]
  %v26 = vld [vmem:[%s1 + $0x28] sm:$0xff]
  %v27 = vld [vmem:[%s1 + $0x30] sm:$0xff]
  %v28 = vld [vmem:[%s1 + $0x38] sm:$0xff]
  %v29 = vld [vmem:[%s2] sm:$0x1]
  %v31 = vlaneseq
  %v32 = vshrl.u32 %v31, 7
  %v33 = vsub.s32 0, %v32
  %v34 = vrot.slane %v29, %v33
  %vm36 = vcmask 523264
  %v38 = vsel %vm36, %v20, 0
  %40 = vmatprep.subr.mxu0 0.0
  %41 = vmatpush1.msra.mxu0 %v21
  %42 = vmatprep.subr.mxu0 0.0
  %43 = vmatpush1.msra.mxu0 %v22
  %44 = vmatprep.subr.mxu0 0.0
  %45 = vmatpush1.msra.mxu0 %v23
  %46 = vmatprep.subr.mxu0 0.0
  %47 = vmatpush1.msra.mxu0 %v24
  %48 = vmatprep.subr.mxu0 0.0
  %49 = vmatpush1.msra.mxu0 %v25
  %50 = vmatprep.subr.mxu0 0.0
  %51 = vmatpush1.msra.mxu0 %v26
  %52 = vmatprep.subr.mxu0 0.0
  %53 = vmatpush1.msra.mxu0 %v27
  %54 = vmatprep.subr.mxu0 0.0
  %55 = vmatpush1.msra.mxu0 %v28
  %56 = vmatprep.subr.mxu0 0.0
  %57 = vmatpush1.msra.mxu0 0.0
  %58 = vmatprep.subr.mxu0 0.0
  %59 = vmatpush1.msra.mxu0 0.0
  %60 = vmatprep.subr.mxu0 0.0
  %61 = vmatpush1.msra.mxu0 0.0
  %62 = vmatprep.subr.mxu0 0.0
  %63 = vmatpush1.msra.mxu0 0.0
  %64 = vmatprep.subr.mxu0 0.0
  %65 = vmatpush1.msra.mxu0 0.0
  %66 = vmatprep.subr.mxu0 0.0
  %67 = vmatpush1.msra.mxu0 0.0
  %68 = vmatprep.subr.mxu0 0.0
  %69 = vmatpush1.msra.mxu0 0.0
  %70 = vmatprep.subr.mxu0 0.0
  %71 = vmatpush1.msra.mxu0 0.0
  %72 = vmatprep.subr.mxu0 0.0
  %73 = vmatpush1.msra.mxu0 0.0
  %74 = vmatprep.subr.mxu0 0.0
  %75 = vmatpush1.msra.mxu0 0.0
  %76 = vmatprep.subr.mxu0 0.0
  %77 = vmatpush1.msra.mxu0 0.0
  %78 = vmatprep.subr.mxu0 0.0
  %79 = vmatpush1.msra.mxu0 0.0
  %80 = vmatprep.subr.mxu0 0.0
  %81 = vmatpush1.msra.mxu0 0.0
  %82 = vmatprep.subr.mxu0 0.0
  %83 = vmatpush1.msra.mxu0 0.0
  %84 = vmatprep.subr.mxu0 0.0
  %85 = vmatpush1.msra.mxu0 0.0
  %86 = vmatprep.subr.mxu0 0.0
  %87 = vmatpush1.msra.mxu0 0.0
  %88 = vmatprep.subr.mxu0 0.0
  %89 = vmatpush1.msra.mxu0 0.0
  %90 = vmatprep.subr.mxu0 0.0
  %91 = vmatpush1.msra.mxu0 0.0
  %92 = vmatprep.subr.mxu0 0.0
  %93 = vmatpush1.msra.mxu0 0.0
  %94 = vmatprep.subr.mxu0 0.0
  %95 = vmatpush1.msra.mxu0 0.0
  %96 = vmatprep.subr.mxu0 0.0
  %97 = vmatpush1.msra.mxu0 0.0
  %98 = vmatprep.subr.mxu0 0.0
  %99 = vmatpush1.msra.mxu0 0.0
  %100 = vmatprep.subr.mxu0 0.0
  %101 = vmatpush1.msra.mxu0 0.0
  %102 = vmatprep.subr.mxu0 0.0
  %103 = vmatpush1.msra.mxu0 0.0
  %104 = vmatprep.mubr.f32.mxu0 0.0
  %105 = vmatmul.mubr.f32.gmra.mrb[0].mxu0 %v38
  %v106 = vpop.f32.mrb[0].mxu0
  %v107 = vadd.f32 %v34, %v106
  %v108 = vpop.f32.mrb[0].mxu0
  %109 = vdwg.mxu0
  %v110 = vmul.f32 %v107, 0.5
  %v111 = vmul.f32 %v107, 0.044715
  %v112 = vmul.f32 %v111, %v107
  %v113 = vmul.f32 %v112, %v107
  %v114 = vadd.f32 %v107, %v113
  %v115 = vmul.f32 %v114, 0.7978846
  %v116 = vtanh.pop %v115
  %v117 = vadd.f32 %v116, 1.0
  %v118 = vmul.f32 %v110, %v117
  %v119 = vld [vmem:[%s3] sm:$0xff]
  %v120 = vld [vmem:[%s3 + $0x8] sm:$0xff]
  %v121 = vld [vmem:[%s3 + $0x10] sm:$0xff]
  %v122 = vld [vmem:[%s3 + $0x18] sm:$0xff]
  %v123 = vld [vmem:[%s3 + $0x20] sm:$0xff]
  %v124 = vld [vmem:[%s3 + $0x28] sm:$0xff]
  %v125 = vld [vmem:[%s3 + $0x30] sm:$0xff]
  %v126 = vld [vmem:[%s3 + $0x38] sm:$0xff]
  %v127 = vld [vmem:[%s3 + $0x40] sm:$0xff]
  %v128 = vld [vmem:[%s3 + $0x48] sm:$0xff]
  %v129 = vld [vmem:[%s3 + $0x50] sm:$0xff]
  %v130 = vld [vmem:[%s3 + $0x58] sm:$0xff]
  %v131 = vld [vmem:[%s3 + $0x60] sm:$0xff]
  %v132 = vld [vmem:[%s3 + $0x68] sm:$0xff]
  %v133 = vld [vmem:[%s3 + $0x70] sm:$0xff]
  %v134 = vld [vmem:[%s3 + $0x78] sm:$0xff]
  %v135 = vld [vmem:[%s4] sm:$0x1]
  %v137 = vlaneseq
  %v138 = vshrl.u32 %v137, 7
  %v139 = vsub.s32 0, %v138
  %v140 = vrot.slane %v135, %v139
  %142 = vmatprep.subr.mxu0 0.0
  %143 = vmatpush1.msra.mxu0 %v119
  %144 = vmatprep.subr.mxu0 0.0
  %145 = vmatpush1.msra.mxu0 %v120
  %146 = vmatprep.subr.mxu0 0.0
  %147 = vmatpush1.msra.mxu0 %v121
  %148 = vmatprep.subr.mxu0 0.0
  %149 = vmatpush1.msra.mxu0 %v122
  %150 = vmatprep.subr.mxu0 0.0
  %151 = vmatpush1.msra.mxu0 %v123
  %152 = vmatprep.subr.mxu0 0.0
  %153 = vmatpush1.msra.mxu0 %v124
  %154 = vmatprep.subr.mxu0 0.0
  %155 = vmatpush1.msra.mxu0 %v125
  %156 = vmatprep.subr.mxu0 0.0
  %157 = vmatpush1.msra.mxu0 %v126
  %158 = vmatprep.subr.mxu0 0.0
  %159 = vmatpush1.msra.mxu0 %v127
  %160 = vmatprep.subr.mxu0 0.0
  %161 = vmatpush1.msra.mxu0 %v128
  %162 = vmatprep.subr.mxu0 0.0
  %163 = vmatpush1.msra.mxu0 %v129
  %164 = vmatprep.subr.mxu0 0.0
  %165 = vmatpush1.msra.mxu0 %v130
  %166 = vmatprep.subr.mxu0 0.0
  %167 = vmatpush1.msra.mxu0 %v131
  %168 = vmatprep.subr.mxu0 0.0
  %169 = vmatpush1.msra.mxu0 %v132
  %170 = vmatprep.subr.mxu0 0.0
  %171 = vmatpush1.msra.mxu0 %v133
  %172 = vmatprep.subr.mxu0 0.0
  %173 = vmatpush1.msra.mxu0 %v134
  %174 = vmatprep.subr.mxu0 0.0
  %175 = vmatpush1.msra.mxu0 0.0
  %176 = vmatprep.subr.mxu0 0.0
  %177 = vmatpush1.msra.mxu0 0.0
  %178 = vmatprep.subr.mxu0 0.0
  %179 = vmatpush1.msra.mxu0 0.0
  %180 = vmatprep.subr.mxu0 0.0
  %181 = vmatpush1.msra.mxu0 0.0
  %182 = vmatprep.subr.mxu0 0.0
  %183 = vmatpush1.msra.mxu0 0.0
  %184 = vmatprep.subr.mxu0 0.0
  %185 = vmatpush1.msra.mxu0 0.0
  %186 = vmatprep.subr.mxu0 0.0
  %187 = vmatpush1.msra.mxu0 0.0
  %188 = vmatprep.subr.mxu0 0.0
  %189 = vmatpush1.msra.mxu0 0.0
  %190 = vmatprep.subr.mxu0 0.0
  %191 = vmatpush1.msra.mxu0 0.0
  %192 = vmatprep.subr.mxu0 0.0
  %193 = vmatpush1.msra.mxu0 0.0
  %194 = vmatprep.subr.mxu0 0.0
  %195 = vmatpush1.msra.mxu0 0.0
  %196 = vmatprep.subr.mxu0 0.0
  %197 = vmatpush1.msra.mxu0 0.0
  %198 = vmatprep.subr.mxu0 0.0
  %199 = vmatpush1.msra.mxu0 0.0
  %200 = vmatprep.subr.mxu0 0.0
  %201 = vmatpush1.msra.mxu0 0.0
  %202 = vmatprep.subr.mxu0 0.0
  %203 = vmatpush1.msra.mxu0 0.0
  %204 = vmatprep.subr.mxu0 0.0
  %205 = vmatpush1.msra.mxu0 0.0
  %206 = vmatprep.mubr.f32.mxu0 0.0
  %207 = vmatmul.mubr.f32.gmra.mrb[0].mxu0 %v118
  %v208 = vpop.f32.mrb[0].mxu0
  %v209 = vadd.f32 %v140, %v208
  %v210 = vpop.f32.mrb[0].mxu0
  %211 = vdwg.mxu0
  %212 = vst [vmem:[%s5] sm:$0x3] %v209
  // Predicated region
  $region22: #{trend_block.1} parent=0 // pred_check
    _
  $region23: #{trend_block.1} parent=0 // pred_check_branch
    %214 = sbr.rel (0) target = $region25
  $region24: #{trend_block.1} parent=0 // pred_region
    _
  $region25: #{trend_block.1} parent=0 // pred_fallthru
    _
  // Predicated region
  $region26: #{trend_block.1} parent=0 // pred_check
    _
  $region27: #{trend_block.1} parent=0 // pred_check_branch
    %216 = sbr.rel (0) target = $region29
  $region28: #{trend_block.1} parent=0 // pred_region
    _
  $region29: #{trend_block.1} parent=0 // pred_fallthru
    _

</llo_original>
